<compile_context>
chip_gen: v6e
topology: v6e:2x2x1
jax: 0.10.0
libtpu: 0.0.40
codegen_flags: <defaults>
</compile_context>

<pallas_src>
import math

import jax
import jax.numpy as jnp
from jax.experimental import pallas as pl
from jax.experimental.pallas import tpu as pltpu


def _round_up(x, m):
    return ((x + m - 1) // m) * m


def _num_tensorcores():
    """Best-effort TensorCore count (2 on v7x, 1 on v5e/v6e). Safe fallback: 1."""
    try:
        info = pltpu.get_tpu_info()
        for attr in ("num_cores", "core_count", "num_tensorcores", "tensorcore_count"):
            if hasattr(info, attr):
                return max(1, int(getattr(info, attr)))
    except Exception:
        pass
    return 1


def _pick_tile(rows, cap):
    """Pick a row tile.

    Prefer the largest multiple of 8 that divides `rows` exactly (so there is
    no zero padding and no post-kernel row slice); otherwise use the capped
    tile and zero-pad the rows.
    """
    cap = max(8, min(_round_up(cap, 8), _round_up(rows, 8)))
    if rows % 8 == 0:
        t = cap
        while t >= 8 and rows % t != 0:
            t -= 8
        if t >= 8 and 2 * t >= cap:  # only accept a divisor that is still "big"
            return t, rows
    return cap, _round_up(rows, cap)


def _decoder_kernel(z_ref, w1_ref, b1_ref, w2_ref, b2_ref,
                    w3_ref, b3_ref, w4_ref, b4_ref, o_ref):
    cdt = w1_ref.dtype  # MXU operand dtype (bf16 fast path or f32)

    z = z_ref[...]
    if z.dtype != cdt:            # no-op on the bf16 path (z already bf16)
        z = z.astype(cdt)

    # Layer 1: Linear(lay4 -> lay3) + ReLU   (f32 accumulate / f32 elementwise)
    h = jnp.dot(z, w1_ref[...], preferred_element_type=jnp.float32)
    h = jnp.maximum(h + b1_ref[...], 0.0)
    # Layer 2: Linear(lay3 -> lay2) + Sigmoid
    h = jnp.dot(h.astype(cdt), w2_ref[...], preferred_element_type=jnp.float32)
    h = jax.nn.sigmoid(h + b2_ref[...])
    # Layer 3: Linear(lay2 -> lay1) + ReLU
    h = jnp.dot(h.astype(cdt), w3_ref[...], preferred_element_type=jnp.float32)
    h = jnp.maximum(h + b3_ref[...], 0.0)
    # Layer 4: Linear(lay1 -> input_size), no activation
    h = jnp.dot(h.astype(cdt), w4_ref[...], preferred_element_type=jnp.float32)
    h = h + b4_ref[...]

    o_ref[...] = h.astype(o_ref.dtype)


def prepare_decoder_params(params, compute_dtype=jnp.bfloat16):
    """Pre-cast weights once (outside the per-call wrapper). Biases stay f32."""
    prepared = {}
    for k, v in params.items():
        if k.startswith("w"):
            prepared[k] = v.astype(compute_dtype)
        else:
            prepared[k] = v.astype(jnp.float32)
    return prepared


def decoder_forward(z, params, *, row_tile=2048, compute_dtype=jnp.bfloat16,
                    out_dtype=jnp.float32):
    """Fused decoder forward.

    z: (..., lay4).  params: transposed weights w{1..4}t of shape (in, out) and
    biases b{1..4} of shape (1, out).

    compute_dtype: MXU operand dtype (bf16 default on all TPU generations;
      f32 for exact matching).  Accumulation / bias / activations are f32
      either way; on the bf16 path the f32 accumulator is re-quantized to bf16
      between layers.
    out_dtype: dtype of the stored output (f32 default; bf16 halves writeback).
    """
    orig_shape = z.shape
    lay4 = orig_shape[-1]
    rows = math.prod(orig_shape[:-1]) if len(orig_shape) > 1 else 1

    def _as(x, dt):
        return x if x.dtype == dt else x.astype(dt)

    # Input rows in the compute dtype (halves the z HBM read on the bf16 path).
    z2d = _as(z.reshape(rows, lay4), compute_dtype)

    w1t = _as(params["w1t"], compute_dtype)
    w2t = _as(params["w2t"], compute_dtype)
    w3t = _as(params["w3t"], compute_dtype)
    w4t = _as(params["w4t"], compute_dtype)
    b1 = _as(params["b1"], jnp.float32)
    b2 = _as(params["b2"], jnp.float32)
    b3 = _as(params["b3"], jnp.float32)
    b4 = _as(params["b4"], jnp.float32)

    d1, d2, d3 = w1t.shape[1], w2t.shape[1], w3t.shape[1]
    out_dim = w4t.shape[1]

    # --- row tiling ---------------------------------------------------------
    tile, rows_pad = _pick_tile(rows, row_tile)

    # Only split work across grid steps for multi-TensorCore parts (v7x).
    cores = _num_tensorcores()
    if cores >= 2 and rows_pad // tile < 2 and tile % 16 == 0:
        tile //= 2
        rows_pad = _round_up(rows, tile)

    # Conservative VMEM clamp (v5e default scoped VMEM is 16 MiB): double
    # buffered z + output blocks plus f32 intermediates must fit.
    in_isz = jnp.dtype(compute_dtype).itemsize
    out_isz = jnp.dtype(out_dtype).itemsize
    per_row = 2 * (lay4 * in_isz + out_dim * out_isz) + 4 * (d1 + d2 + d3)
    max_tile = max(8, ((12 * 1024 * 1024) // max(per_row, 1)) // 8 * 8)
    if tile > max_tile:
        tile = max_tile
        rows_pad = _round_up(rows, tile)

    if rows_pad != rows:
        z2d = jnp.pad(z2d, ((0, rows_pad - rows), (0, 0)))
    grid = (rows_pad // tile,)

    def const_spec(shape):
        # Whole array resident in VMEM; constant index_map => DMA'd once and
        # never re-fetched across row steps.
        ndim = len(shape)
        return pl.BlockSpec(shape, lambda i, _n=ndim: (0,) * _n)

    # Advisory cost estimate for the XLA scheduler.
    flops = 2 * rows_pad * (lay4 * d1 + d1 * d2 + d2 * d3 + d3 * out_dim)
    transcendentals = rows_pad * d2  # sigmoid exp
    weight_bytes = sum(int(a.size) * a.dtype.itemsize
                       for a in (w1t, b1, w2t, b2, w3t, b3, w4t, b4))
    bytes_accessed = (rows_pad * lay4 * in_isz
                      + rows_pad * out_dim * out_isz + weight_bytes)

    out = pl.pallas_call(
        _decoder_kernel,
        out_shape=jax.ShapeDtypeStruct((rows_pad, out_dim), out_dtype),
        grid=grid,
        in_specs=[
            pl.BlockSpec((tile, lay4), lambda i: (i, 0)),   # z rows
            const_spec(w1t.shape), const_spec(b1.shape),
            const_spec(w2t.shape), const_spec(b2.shape),
            const_spec(w3t.shape), const_spec(b3.shape),
            const_spec(w4t.shape), const_spec(b4.shape),
        ],
        # Output block width == full out_dim: contiguous store, no lane padding,
        # no post-kernel column slice.
        out_specs=pl.BlockSpec((tile, out_dim), lambda i: (i, 0)),
        compiler_params=pltpu.CompilerParams(
            dimension_semantics=("parallel",)),
        cost_estimate=pl.CostEstimate(flops=flops,
                                      transcendentals=transcendentals,
                                      bytes_accessed=bytes_accessed),
    )(z2d, w1t, b1, w2t, b2, w3t, b3, w4t, b4)

    if rows_pad != rows:
        out = out[:rows]
    return out.reshape(*orig_shape[:-1], out_dim)


def init_decoder_params(key, lay1, lay2, lay3, lay4, input_size):
    """Deterministic init mimicking nn.Linear default (uniform +/- 1/sqrt(fan_in)).
    Weights stored transposed (in, out); biases as (1, out)."""
    dims = [(lay4, lay3), (lay3, lay2), (lay2, lay1), (lay1, input_size)]
    params = {}
    keys = jax.random.split(key, 2 * len(dims))
    for idx, (fan_in, fan_out) in enumerate(dims):
        bound = 1.0 / (fan_in ** 0.5)
        w = jax.random.uniform(keys[2 * idx], (fan_out, fan_in),
                               minval=-bound, maxval=bound, dtype=jnp.float32)
        b = jax.random.uniform(keys[2 * idx + 1], (fan_out,),
                               minval=-bound, maxval=bound, dtype=jnp.float32)
        params[f"w{idx + 1}t"] = w.T                    # (in, out)
        params[f"b{idx + 1}"] = b.reshape(1, fan_out)   # (1, out)
    return params


def decoder_ref(z, params):
    """Pure-JAX reference with identical semantics to the PyTorch Decoder."""
    h = jnp.maximum(z @ params["w1t"] + params["b1"], 0.0)
    h = jax.nn.sigmoid(h @ params["w2t"] + params["b2"])
    h = jnp.maximum(h @ params["w3t"] + params["b3"], 0.0)
    return h @ params["w4t"] + params["b4"]


if __name__ == "__main__":
    # Small shapes consistent with the module: decoder widths lay4<lay3<lay2<lay1,
    # output feature count = input_size of the original data.
    lay1, lay2, lay3, lay4 = 128, 64, 32, 16
    input_size = 32
    batch, seq = 2, 8          # latent z: (batch, seq, lay4) -> 16 rows

    key = jax.random.PRNGKey(0)
    kz, kp = jax.random.split(key)
    z = jax.random.normal(kz, (batch, seq, lay4), dtype=jnp.float32)
    params = init_decoder_params(kp, lay1, lay2, lay3, lay4, input_size)

    ref = decoder_ref(z.reshape(-1, lay4), params).reshape(batch, seq, input_size)

    # f32 compute path: exact match against the reference.
    out_f32 = jax.block_until_ready(
        decoder_forward(z, params, compute_dtype=jnp.float32))
    assert out_f32.shape == (batch, seq, input_size)
    assert jnp.allclose(out_f32, ref, atol=1e-5, rtol=1e-5), "f32 mismatch vs reference"

    # Default (bf16 MXU operands, f32 accumulation, f32 output).
    params_bf16 = prepare_decoder_params(params, jnp.bfloat16)
    out_bf16 = jax.block_until_ready(decoder_forward(z, params_bf16))
    assert out_bf16.shape == (batch, seq, input_size)
    assert jnp.allclose(out_bf16, ref, atol=1e-1, rtol=1e-1), "bf16 path mismatch"

    # bf16 output store (halved writeback) still close to reference.
    out_bf16_o = jax.block_until_ready(
        decoder_forward(z, params_bf16, out_dtype=jnp.bfloat16))
    assert out_bf16_o.dtype == jnp.bfloat16
    assert jnp.allclose(out_bf16_o.astype(jnp.float32), ref, atol=1e-1, rtol=1e-1), \
        "bf16-output path mismatch"

    # Uneven row count: exercises the pad-and-slice fallback (no divisibility assert).
    z_odd = jax.random.normal(jax.random.PRNGKey(1), (3, 5, lay4), dtype=jnp.float32)
    out_odd = jax.block_until_ready(
        decoder_forward(z_odd, params, compute_dtype=jnp.float32))
    ref_odd = decoder_ref(z_odd.reshape(-1, lay4), params).reshape(3, 5, input_size)
    assert jnp.allclose(out_odd, ref_odd, atol=1e-5, rtol=1e-5), "padded-rows mismatch"

    print("KERNEL_OK")
</pallas_src>

<mosaic_0001>
module attributes {stable_mosaic.version = 11 : i64} {
  func.func @_decoder_kernel(%arg0: i32, %arg1: memref<16x16xf32, #tpu.memory_space<vmem>>, %arg2: memref<16x32xf32, #tpu.memory_space<vmem>>, %arg3: memref<1x32xf32, #tpu.memory_space<vmem>>, %arg4: memref<32x64xf32, #tpu.memory_space<vmem>>, %arg5: memref<1x64xf32, #tpu.memory_space<vmem>>, %arg6: memref<64x128xf32, #tpu.memory_space<vmem>>, %arg7: memref<1x128xf32, #tpu.memory_space<vmem>>, %arg8: memref<128x32xf32, #tpu.memory_space<vmem>>, %arg9: memref<1x32xf32, #tpu.memory_space<vmem>>, %arg10: memref<16x32xf32, #tpu.memory_space<vmem>>) attributes {dimension_semantics = [#tpu.dimension_semantics<parallel>], iteration_bounds = array<i64: 1>, scalar_prefetch = 0 : i64, scratch_operands = 0 : i64, tpu.core_type = #tpu.core_type<tc>, window_params = [{transform_indices = @transform_0, window_bounds = array<i64: 16, 16>}, {pipeline_mode = #tpu.pipeline_mode<synchronous>, transform_indices = @transform_1, window_bounds = array<i64: 16, 32>}, {pipeline_mode = #tpu.pipeline_mode<synchronous>, transform_indices = @transform_2, window_bounds = array<i64: 1, 32>}, {pipeline_mode = #tpu.pipeline_mode<synchronous>, transform_indices = @transform_3, window_bounds = array<i64: 32, 64>}, {pipeline_mode = #tpu.pipeline_mode<synchronous>, transform_indices = @transform_4, window_bounds = array<i64: 1, 64>}, {pipeline_mode = #tpu.pipeline_mode<synchronous>, transform_indices = @transform_5, window_bounds = array<i64: 64, 128>}, {pipeline_mode = #tpu.pipeline_mode<synchronous>, transform_indices = @transform_6, window_bounds = array<i64: 1, 128>}, {pipeline_mode = #tpu.pipeline_mode<synchronous>, transform_indices = @transform_7, window_bounds = array<i64: 128, 32>}, {pipeline_mode = #tpu.pipeline_mode<synchronous>, transform_indices = @transform_8, window_bounds = array<i64: 1, 32>}, {transform_indices = @transform_9, window_bounds = array<i64: 16, 32>}]} {
    %c0 = arith.constant 0 : index
    %c0_0 = arith.constant 0 : index
    %0 = vector.load %arg1[%c0, %c0_0] : memref<16x16xf32, #tpu.memory_space<vmem>>, vector<16x16xf32>
    %c0_1 = arith.constant 0 : index
    %c0_2 = arith.constant 0 : index
    %1 = vector.load %arg2[%c0_1, %c0_2] : memref<16x32xf32, #tpu.memory_space<vmem>>, vector<16x32xf32>
    %cst = arith.constant dense<0.000000e+00> : vector<16x32xf32>
    %2 = tpu.matmul %0, %1, %cst {dimension_numbers = #tpu.dot_dimension_numbers<[1], [0], [0], [1], [0, 0, 1, 1], [], []>} : vector<16x16xf32>, vector<16x32xf32>, vector<16x32xf32> -> vector<16x32xf32>
    %c0_3 = arith.constant 0 : index
    %c0_4 = arith.constant 0 : index
    %3 = vector.load %arg3[%c0_3, %c0_4] : memref<1x32xf32, #tpu.memory_space<vmem>>, vector<1x32xf32>
    %4 = vector.broadcast %3 : vector<1x32xf32> to vector<16x32xf32>
    %5 = arith.addf %2, %4 : vector<16x32xf32>
    %cst_5 = arith.constant 0.000000e+00 : f32
    %6 = vector.broadcast %cst_5 : f32 to vector<16x32xf32>
    %7 = arith.maximumf %5, %6 : vector<16x32xf32>
    %c0_6 = arith.constant 0 : index
    %c0_7 = arith.constant 0 : index
    %8 = vector.load %arg4[%c0_6, %c0_7] : memref<32x64xf32, #tpu.memory_space<vmem>>, vector<32x64xf32>
    %cst_8 = arith.constant dense<0.000000e+00> : vector<16x64xf32>
    %9 = tpu.matmul %7, %8, %cst_8 {dimension_numbers = #tpu.dot_dimension_numbers<[1], [0], [0], [1], [0, 0, 1, 1], [], []>} : vector<16x32xf32>, vector<32x64xf32>, vector<16x64xf32> -> vector<16x64xf32>
    %c0_9 = arith.constant 0 : index
    %c0_10 = arith.constant 0 : index
    %10 = vector.load %arg5[%c0_9, %c0_10] : memref<1x64xf32, #tpu.memory_space<vmem>>, vector<1x64xf32>
    %11 = vector.broadcast %10 : vector<1x64xf32> to vector<16x64xf32>
    %12 = arith.addf %9, %11 : vector<16x64xf32>
    %13 = arith.negf %12 : vector<16x64xf32>
    %14 = math.exp %13 : vector<16x64xf32>
    %cst_11 = arith.constant 1.000000e+00 : f32
    %15 = vector.broadcast %cst_11 : f32 to vector<16x64xf32>
    %16 = arith.addf %15, %14 : vector<16x64xf32>
    %17 = arith.divf %15, %16 : vector<16x64xf32>
    %c0_12 = arith.constant 0 : index
    %c0_13 = arith.constant 0 : index
    %18 = vector.load %arg6[%c0_12, %c0_13] : memref<64x128xf32, #tpu.memory_space<vmem>>, vector<64x128xf32>
    %cst_14 = arith.constant dense<0.000000e+00> : vector<16x128xf32>
    %19 = tpu.matmul %17, %18, %cst_14 {dimension_numbers = #tpu.dot_dimension_numbers<[1], [0], [0], [1], [0, 0, 1, 1], [], []>} : vector<16x64xf32>, vector<64x128xf32>, vector<16x128xf32> -> vector<16x128xf32>
    %c0_15 = arith.constant 0 : index
    %c0_16 = arith.constant 0 : index
    %20 = vector.load %arg7[%c0_15, %c0_16] : memref<1x128xf32, #tpu.memory_space<vmem>>, vector<1x128xf32>
    %21 = vector.broadcast %20 : vector<1x128xf32> to vector<16x128xf32>
    %22 = arith.addf %19, %21 : vector<16x128xf32>
    %cst_17 = arith.constant 0.000000e+00 : f32
    %23 = vector.broadcast %cst_17 : f32 to vector<16x128xf32>
    %24 = arith.maximumf %22, %23 : vector<16x128xf32>
    %c0_18 = arith.constant 0 : index
    %c0_19 = arith.constant 0 : index
    %25 = vector.load %arg8[%c0_18, %c0_19] : memref<128x32xf32, #tpu.memory_space<vmem>>, vector<128x32xf32>
    %cst_20 = arith.constant dense<0.000000e+00> : vector<16x32xf32>
    %26 = tpu.matmul %24, %25, %cst_20 {dimension_numbers = #tpu.dot_dimension_numbers<[1], [0], [0], [1], [0, 0, 1, 1], [], []>} : vector<16x128xf32>, vector<128x32xf32>, vector<16x32xf32> -> vector<16x32xf32>
    %c0_21 = arith.constant 0 : index
    %c0_22 = arith.constant 0 : index
    %27 = vector.load %arg9[%c0_21, %c0_22] : memref<1x32xf32, #tpu.memory_space<vmem>>, vector<1x32xf32>
    %28 = vector.broadcast %27 : vector<1x32xf32> to vector<16x32xf32>
    %29 = arith.addf %26, %28 : vector<16x32xf32>
    %c0_23 = arith.constant 0 : index
    %c0_24 = arith.constant 0 : index
    %30 = vector.load %arg10[%c0_23, %c0_24] : memref<16x32xf32, #tpu.memory_space<vmem>>, vector<16x32xf32>
    tpu.vector_store %arg10[%c0_23, %c0_24], %29 {strides = array<i32>} : memref<16x32xf32, #tpu.memory_space<vmem>>, vector<16x32xf32>,
    return
  }
  func.func @transform_0(%arg0: i32) -> (i32, i32) {
    %c0_i32 = arith.constant 0 : i32
    %c0_i32_0 = arith.constant 0 : i32
    return %arg0, %c0_i32 : i32, i32
  }
  func.func @transform_1(%arg0: i32) -> (i32, i32) {
    %c0_i32 = arith.constant 0 : i32
    %c0_i32_0 = arith.constant 0 : i32
    %c0_i32_1 = arith.constant 0 : i32
    return %c0_i32, %c0_i32_0 : i32, i32
  }
  func.func @transform_2(%arg0: i32) -> (i32, i32) {
    %c0_i32 = arith.constant 0 : i32
    %c0_i32_0 = arith.constant 0 : i32
    %c0_i32_1 = arith.constant 0 : i32
    return %c0_i32, %c0_i32_0 : i32, i32
  }
  func.func @transform_3(%arg0: i32) -> (i32, i32) {
    %c0_i32 = arith.constant 0 : i32
    %c0_i32_0 = arith.constant 0 : i32
    %c0_i32_1 = arith.constant 0 : i32
    return %c0_i32, %c0_i32_0 : i32, i32
  }
  func.func @transform_4(%arg0: i32) -> (i32, i32) {
    %c0_i32 = arith.constant 0 : i32
    %c0_i32_0 = arith.constant 0 : i32
    %c0_i32_1 = arith.constant 0 : i32
    return %c0_i32, %c0_i32_0 : i32, i32
  }
  func.func @transform_5(%arg0: i32) -> (i32, i32) {
    %c0_i32 = arith.constant 0 : i32
    %c0_i32_0 = arith.constant 0 : i32
    %c0_i32_1 = arith.constant 0 : i32
    return %c0_i32, %c0_i32_0 : i32, i32
  }
  func.func @transform_6(%arg0: i32) -> (i32, i32) {
    %c0_i32 = arith.constant 0 : i32
    %c0_i32_0 = arith.constant 0 : i32
    %c0_i32_1 = arith.constant 0 : i32
    return %c0_i32, %c0_i32_0 : i32, i32
  }
  func.func @transform_7(%arg0: i32) -> (i32, i32) {
    %c0_i32 = arith.constant 0 : i32
    %c0_i32_0 = arith.constant 0 : i32
    %c0_i32_1 = arith.constant 0 : i32
    return %c0_i32, %c0_i32_0 : i32, i32
  }
  func.func @transform_8(%arg0: i32) -> (i32, i32) {
    %c0_i32 = arith.constant 0 : i32
    %c0_i32_0 = arith.constant 0 : i32
    %c0_i32_1 = arith.constant 0 : i32
    return %c0_i32, %c0_i32_0 : i32, i32
  }
  func.func @transform_9(%arg0: i32) -> (i32, i32) {
    %c0_i32 = arith.constant 0 : i32
    %c0_i32_0 = arith.constant 0 : i32
    return %arg0, %c0_i32 : i32, i32
  }
}

</mosaic_0001>

<llo_original>
// kernel: tpu_custom_call.1
$region0: #{tpu_custom_call.1}
  #allocation0 [shape = 'u32[]', space=smem, size = 0x4, offset = 0x4, fixed_abs, tag = 'smem constant byte address 0x4 - core index']
  #allocation1 [shape = 'u32[144,128]{1,0:T(1,128)}', space=vmem, size = 0x12000, scoped, tag = 'internal scratch']
  %s0 = inlined_call_operand.vmem [shape: f32[16,16], index: 0, kind: input, shape index: {}]
  %s1 = inlined_call_operand.vmem [shape: f32[16,32], index: 1, kind: input, shape index: {}]
  %s2 = inlined_call_operand.vmem [shape: f32[1,32], index: 2, kind: input, shape index: {}]
  %s3 = inlined_call_operand.vmem [shape: f32[32,64], index: 3, kind: input, shape index: {}]
  %s4 = inlined_call_operand.vmem [shape: f32[1,64], index: 4, kind: input, shape index: {}]
  %s5 = inlined_call_operand.vmem [shape: f32[64,128], index: 5, kind: input, shape index: {}]
  %s6 = inlined_call_operand.vmem [shape: f32[1,128], index: 6, kind: input, shape index: {}]
  %s7 = inlined_call_operand.vmem [shape: f32[128,32], index: 7, kind: input, shape index: {}]
  %s8 = inlined_call_operand.vmem [shape: f32[1,32], index: 8, kind: input, shape index: {}]
  %s9 = inlined_call_operand.hbm [shape: f32[16,32], index: 9, kind: output, shape index: {}]
  %s10 = sld [smem:[#allocation0]]
  $region46: #{tpu_custom_call.1} parent=0
    _
  %s12 = ssub.s32 1, %s10
  %s13 = scalar_select 0, %s12, %s10
  $region1: #{tpu_custom_call.1} parent=0
    #allocation2 [shape = 'u8[8192]{0}', space=vmem, size = 0x2000, scoped, tag = 'output window, operand 0, single buffered']
    #allocation3 [shape = 's32[1]{0}', space=sflag, size = 0x4, scoped, tag = 'scoped memory for tpu_custom_call.1']
    %14 = vsyncpa [#allocation3], 0
    // Predicated region
    $region2: #{tpu_custom_call.1} parent=1 // pred_check
      _
    $region3: #{tpu_custom_call.1} parent=1 // pred_check_branch
      %16 = sbr.rel (0) target = $region5
    $region4: #{tpu_custom_call.1} parent=1 // pred_region
      _
    $region5: #{tpu_custom_call.1} parent=1 // pred_fallthru
      _
    // Predicated region
    $region6: #{tpu_custom_call.1} parent=1 // pred_check
      _
    $region7: #{tpu_custom_call.1} parent=1 // pred_check_branch
      %18 = sbr.rel (0) target = $region9
    $region8: #{tpu_custom_call.1} parent=1 // pred_region
      _
    $region9: #{tpu_custom_call.1} parent=1 // pred_fallthru
      _
    // Predicated region
    $region10: #{tpu_custom_call.1} parent=1 // pred_check
      _
    $region11: #{tpu_custom_call.1} parent=1 // pred_check_branch
      %20 = sbr.rel (0) target = $region13
    $region12: #{tpu_custom_call.1} parent=1 // pred_region
      _
    $region13: #{tpu_custom_call.1} parent=1 // pred_fallthru
      _
    // Predicated region
    $region14: #{tpu_custom_call.1} parent=1 // pred_check
      _
    $region15: #{tpu_custom_call.1} parent=1 // pred_check_branch
      %22 = sbr.rel (0) target = $region17
    $region16: #{tpu_custom_call.1} parent=1 // pred_region
      _
    $region17: #{tpu_custom_call.1} parent=1 // pred_fallthru
      _
    // Predicated region
    $region18: #{tpu_custom_call.1} parent=1 // pred_check
      _
    $region19: #{tpu_custom_call.1} parent=1 // pred_check_branch
      %24 = sbr.rel (0) target = $region21
    $region20: #{tpu_custom_call.1} parent=1 // pred_region
      _
    $region21: #{tpu_custom_call.1} parent=1 // pred_fallthru
      _
    // Predicated region
    $region22: #{tpu_custom_call.1} parent=1 // pred_check
      _
    $region23: #{tpu_custom_call.1} parent=1 // pred_check_branch
      %26 = sbr.rel (0) target = $region25
    $region24: #{tpu_custom_call.1} parent=1 // pred_region
      _
    $region25: #{tpu_custom_call.1} parent=1 // pred_fallthru
      _
    // Predicated region
    $region26: #{tpu_custom_call.1} parent=1 // pred_check
      _
    $region27: #{tpu_custom_call.1} parent=1 // pred_check_branch
      %28 = sbr.rel (0) target = $region29
    $region28: #{tpu_custom_call.1} parent=1 // pred_region
      _
    $region29: #{tpu_custom_call.1} parent=1 // pred_fallthru
      _
    // Predicated region
    $region30: #{tpu_custom_call.1} parent=1 // pred_check
      _
    $region31: #{tpu_custom_call.1} parent=1 // pred_check_branch
      %30 = sbr.rel (0) target = $region33
    $region32: #{tpu_custom_call.1} parent=1 // pred_region
      _
    $region33: #{tpu_custom_call.1} parent=1 // pred_fallthru
      _
    // Predicated region
    $region34: #{tpu_custom_call.1} parent=1 // pred_check
      _
    $region35: #{tpu_custom_call.1} parent=1 // pred_check_branch
      %32 = sbr.rel (0) target = $region37
    $region36: #{tpu_custom_call.1} parent=1 // pred_region
      _
    $region37: #{tpu_custom_call.1} parent=1 // pred_fallthru
      _
    %v33 = vld [vmem:[%s0] sm:$0xff]
    %v34 = vld [vmem:[%s0 + $0x8] sm:$0xff]
    %v35 = vld [vmem:[%s1] sm:$0xff]
    %v36 = vld [vmem:[%s1 + $0x8] sm:$0xff]
    %v37 = vld [vmem:[%s2] sm:$0x1]
    %v39 = vlaneseq
    %v40 = vshrl.u32 %v39, 7
    %v41 = vsub.s32 0, %v40
    %v42 = vrot.slane %v37, %v41
    %vm44 = vcmask 130048
    %v46 = vsel %vm44, %v33, 0
    %v49 = vsel %vm44, %v34, 0
    %51 = vmatprep.subr.mxu0 0.0
    %52 = vmatpush1.msra.mxu0 0.0
    %53 = vmatprep.subr.mxu0 0.0
    %54 = vmatpush1.msra.mxu0 0.0
    %55 = vmatprep.subr.mxu0 0.0
    %56 = vmatpush1.msra.mxu0 0.0
    %57 = vmatprep.subr.mxu0 0.0
    %58 = vmatpush1.msra.mxu0 0.0
    %59 = vmatprep.subr.mxu0 0.0
    %60 = vmatpush1.msra.mxu0 0.0
    %61 = vmatprep.subr.mxu0 0.0
    %62 = vmatpush1.msra.mxu0 0.0
    %63 = vmatprep.subr.mxu0 0.0
    %64 = vmatpush1.msra.mxu0 0.0
    %65 = vmatprep.subr.mxu0 0.0
    %66 = vmatpush1.msra.mxu0 0.0
    %67 = vmatprep.subr.mxu0 0.0
    %68 = vmatpush1.msra.mxu0 0.0
    %69 = vmatprep.subr.mxu0 0.0
    %70 = vmatpush1.msra.mxu0 0.0
    %71 = vmatprep.subr.mxu0 0.0
    %72 = vmatpush1.msra.mxu0 0.0
    %73 = vmatprep.subr.mxu0 0.0
    %74 = vmatpush1.msra.mxu0 0.0
    %75 = vmatprep.subr.mxu0 0.0
    %76 = vmatpush1.msra.mxu0 0.0
    %77 = vmatprep.subr.mxu0 0.0
    %78 = vmatpush1.msra.mxu0 0.0
    %79 = vmatprep.subr.mxu0 0.0
    %80 = vmatpush1.msra.mxu0 %v36
    %81 = vmatprep.subr.mxu0 0.0
    %82 = vmatpush1.msra.mxu0 %v35
    %83 = vmatprep.subr.mxu0 0.0
    %84 = vmatpush2.msra.mxu0 0.0
    %85 = vmatprep.subr.mxu0 0.0
    %86 = vmatpush2.msra.mxu0 0.0
    %87 = vmatprep.subr.mxu0 0.0
    %88 = vmatpush2.msra.mxu0 0.0
    %89 = vmatprep.subr.mxu0 0.0
    %90 = vmatpush2.msra.mxu0 0.0
    %91 = vmatprep.subr.mxu0 0.0
    %92 = vmatpush2.msra.mxu0 0.0
    %93 = vmatprep.subr.mxu0 0.0
    %94 = vmatpush2.msra.mxu0 0.0
    %95 = vmatprep.subr.mxu0 0.0
    %96 = vmatpush2.msra.mxu0 0.0
    %97 = vmatprep.subr.mxu0 0.0
    %98 = vmatpush2.msra.mxu0 0.0
    %99 = vmatprep.subr.mxu0 0.0
    %100 = vmatpush2.msra.mxu0 0.0
    %101 = vmatprep.subr.mxu0 0.0
    %102 = vmatpush2.msra.mxu0 0.0
    %103 = vmatprep.subr.mxu0 0.0
    %104 = vmatpush2.msra.mxu0 0.0
    %105 = vmatprep.subr.mxu0 0.0
    %106 = vmatpush2.msra.mxu0 0.0
    %107 = vmatprep.subr.mxu0 0.0
    %108 = vmatpush2.msra.mxu0 0.0
    %109 = vmatprep.subr.mxu0 0.0
    %110 = vmatpush2.msra.mxu0 0.0
    %111 = vmatprep.subr.mxu0 0.0
    %112 = vmatpush2.msra.mxu0 0.0
    %113 = vmatprep.subr.mxu0 0.0
    %114 = vmatpush2.msra.mxu0 0.0
    %115 = vmatprep.mubr.f32.mxu0 0.0
    %116 = vmatmul.mubr.f32.gmra.mxu0 %v46
    %v117 = vpop.f32.mrf.mxu0
    %v118 = vadd.f32 %v42, %v117
    %v119 = vpop.f32.mrf.mxu0
    %120 = vmatprep.mubr.f32.mxu0 0.0
    %121 = vmatmul.mubr.f32.gmra.mxu0 %v49
    %v122 = vpop.f32.mrf.mxu0
    %v123 = vadd.f32 %v42, %v122
    %v124 = vpop.f32.mrf.mxu0
    %125 = vdwg.mxu0
    %v126 = vmax.f32 %v118, 0.0
    %v127 = vmax.f32 %v123, 0.0
    %v128 = vld [vmem:[%s3] sm:$0xff]
    %v129 = vld [vmem:[%s3 + $0x8] sm:$0xff]
    %v130 = vld [vmem:[%s3 + $0x10] sm:$0xff]
    %v131 = vld [vmem:[%s3 + $0x18] sm:$0xff]
    %v132 = vld [vmem:[%s4] sm:$0x1]
    %v134 = vlaneseq
    %v135 = vshrl.u32 %v134, 7
    %v136 = vsub.s32 0, %v135
    %v137 = vrot.slane %v132, %v136
    %vm139 = vcmask 261120
    %v141 = vsel %vm139, %v126, 0
    %v144 = vsel %vm139, %v127, 0
    %146 = vmatprep.subr.mxu0 0.0
    %147 = vmatpush1.msra.mxu0 0.0
    %148 = vmatprep.subr.mxu0 0.0
    %149 = vmatpush1.msra.mxu0 0.0
    %150 = vmatprep.subr.mxu0 0.0
    %151 = vmatpush1.msra.mxu0 0.0
    %152 = vmatprep.subr.mxu0 0.0
    %153 = vmatpush1.msra.mxu0 0.0
    %154 = vmatprep.subr.mxu0 0.0
    %155 = vmatpush1.msra.mxu0 0.0
    %156 = vmatprep.subr.mxu0 0.0
    %157 = vmatpush1.msra.mxu0 0.0
    %158 = vmatprep.subr.mxu0 0.0
    %159 = vmatpush1.msra.mxu0 0.0
    %160 = vmatprep.subr.mxu0 0.0
    %161 = vmatpush1.msra.mxu0 0.0
    %162 = vmatprep.subr.mxu0 0.0
    %163 = vmatpush1.msra.mxu0 0.0
    %164 = vmatprep.subr.mxu0 0.0
    %165 = vmatpush1.msra.mxu0 0.0
    %166 = vmatprep.subr.mxu0 0.0
    %167 = vmatpush1.msra.mxu0 0.0
    %168 = vmatprep.subr.mxu0 0.0
    %169 = vmatpush1.msra.mxu0 0.0
    %170 = vmatprep.subr.mxu0 0.0
    %171 = vmatpush1.msra.mxu0 %v131
    %172 = vmatprep.subr.mxu0 0.0
    %173 = vmatpush1.msra.mxu0 %v130
    %174 = vmatprep.subr.mxu0 0.0
    %175 = vmatpush1.msra.mxu0 %v129
    %176 = vmatprep.subr.mxu0 0.0
    %177 = vmatpush1.msra.mxu0 %v128
    %178 = vmatprep.subr.mxu0 0.0
    %179 = vmatpush2.msra.mxu0 0.0
    %180 = vmatprep.subr.mxu0 0.0
    %181 = vmatpush2.msra.mxu0 0.0
    %182 = vmatprep.subr.mxu0 0.0
    %183 = vmatpush2.msra.mxu0 0.0
    %184 = vmatprep.subr.mxu0 0.0
    %185 = vmatpush2.msra.mxu0 0.0
    %186 = vmatprep.subr.mxu0 0.0
    %187 = vmatpush2.msra.mxu0 0.0
    %188 = vmatprep.subr.mxu0 0.0
    %189 = vmatpush2.msra.mxu0 0.0
    %190 = vmatprep.subr.mxu0 0.0
    %191 = vmatpush2.msra.mxu0 0.0
    %192 = vmatprep.subr.mxu0 0.0
    %193 = vmatpush2.msra.mxu0 0.0
    %194 = vmatprep.subr.mxu0 0.0
    %195 = vmatpush2.msra.mxu0 0.0
    %196 = vmatprep.subr.mxu0 0.0
    %197 = vmatpush2.msra.mxu0 0.0
    %198 = vmatprep.subr.mxu0 0.0
    %199 = vmatpush2.msra.mxu0 0.0
    %200 = vmatprep.subr.mxu0 0.0
    %201 = vmatpush2.msra.mxu0 0.0
    %202 = vmatprep.subr.mxu0 0.0
    %203 = vmatpush2.msra.mxu0 0.0
    %204 = vmatprep.subr.mxu0 0.0
    %205 = vmatpush2.msra.mxu0 0.0
    %206 = vmatprep.subr.mxu0 0.0
    %207 = vmatpush2.msra.mxu0 0.0
    %208 = vmatprep.subr.mxu0 0.0
    %209 = vmatpush2.msra.mxu0 0.0
    %210 = vmatprep.mubr.f32.mxu0 0.0
    %211 = vmatmul.mubr.f32.gmra.mxu0 %v141
    %v212 = vpop.f32.mrf.mxu0
    %v213 = vadd.f32 %v137, %v212
    %v214 = vpop.f32.mrf.mxu0
    %215 = vmatprep.mubr.f32.mxu0 0.0
    %216 = vmatmul.mubr.f32.gmra.mxu0 %v144
    %v217 = vpop.f32.mrf.mxu0
    %v218 = vadd.f32 %v137, %v217
    %v219 = vpop.f32.mrf.mxu0
    %220 = vdwg.mxu0
    %v221 = vxor.u32 %v213, 2147483648
    %v222 = vxor.u32 %v218, 2147483648
    %v223 = vmul.f32 %v221, 1.442695
    %v224 = vpow.pop %v223
    %v225 = vmul.f32 %v222, 1.442695
    %v226 = vpow.pop %v225
    %v227 = vadd.f32 %v224, 1.0
    %v228 = vadd.f32 %v226, 1.0
    %v229 = vrcp.pop %v227
    %v230 = vmul.f32 1.0, %v229
    %v231 = vrcp.pop %v228
    %v232 = vmul.f32 1.0, %v231
    %v233 = vld [vmem:[%s5] sm:$0xff]
    %v234 = vld [vmem:[%s5 + $0x8] sm:$0xff]
    %v235 = vld [vmem:[%s5 + $0x10] sm:$0xff]
    %v236 = vld [vmem:[%s5 + $0x18] sm:$0xff]
    %v237 = vld [vmem:[%s5 + $0x20] sm:$0xff]
    %v238 = vld [vmem:[%s5 + $0x28] sm:$0xff]
    %v239 = vld [vmem:[%s5 + $0x30] sm:$0xff]
    %v240 = vld [vmem:[%s5 + $0x38] sm:$0xff]
    %v241 = vld [vmem:[%s6] sm:$0x1]
    %v243 = vlaneseq
    %v244 = vshrl.u32 %v243, 7
    %v245 = vsub.s32 0, %v244
    %v246 = vrot.slane %v241, %v245
    %vm248 = vcmask 523264
    %v250 = vsel %vm248, %v230, 0
    %v253 = vsel %vm248, %v232, 0
    %255 = vmatprep.subr.mxu0 0.0
    %256 = vmatpush1.msra.mxu0 0.0
    %257 = vmatprep.subr.mxu0 0.0
    %258 = vmatpush1.msra.mxu0 0.0
    %259 = vmatprep.subr.mxu0 0.0
    %260 = vmatpush1.msra.mxu0 0.0
    %261 = vmatprep.subr.mxu0 0.0
    %262 = vmatpush1.msra.mxu0 0.0
    %263 = vmatprep.subr.mxu0 0.0
    %264 = vmatpush1.msra.mxu0 0.0
    %265 = vmatprep.subr.mxu0 0.0
    %266 = vmatpush1.msra.mxu0 0.0
    %267 = vmatprep.subr.mxu0 0.0
    %268 = vmatpush1.msra.mxu0 0.0
    %269 = vmatprep.subr.mxu0 0.0
    %270 = vmatpush1.msra.mxu0 0.0
    %271 = vmatprep.subr.mxu0 0.0
    %272 = vmatpush1.msra.mxu0 %v240
    %273 = vmatprep.subr.mxu0 0.0
    %274 = vmatpush1.msra.mxu0 %v239
    %275 = vmatprep.subr.mxu0 0.0
    %276 = vmatpush1.msra.mxu0 %v238
    %277 = vmatprep.subr.mxu0 0.0
    %278 = vmatpush1.msra.mxu0 %v237
    %279 = vmatprep.subr.mxu0 0.0
    %280 = vmatpush1.msra.mxu0 %v236
    %281 = vmatprep.subr.mxu0 0.0
    %282 = vmatpush1.msra.mxu0 %v235
    %283 = vmatprep.subr.mxu0 0.0
    %284 = vmatpush1.msra.mxu0 %v234
    %285 = vmatprep.subr.mxu0 0.0
    %286 = vmatpush1.msra.mxu0 %v233
    %287 = vmatprep.subr.mxu0 0.0
    %288 = vmatpush2.msra.mxu0 0.0
    %289 = vmatprep.subr.mxu0 0.0
    %290 = vmatpush2.msra.mxu0 0.0
    %291 = vmatprep.subr.mxu0 0.0
    %292 = vmatpush2.msra.mxu0 0.0
    %293 = vmatprep.subr.mxu0 0.0
    %294 = vmatpush2.msra.mxu0 0.0
    %295 = vmatprep.subr.mxu0 0.0
    %296 = vmatpush2.msra.mxu0 0.0
    %297 = vmatprep.subr.mxu0 0.0
    %298 = vmatpush2.msra.mxu0 0.0
    %299 = vmatprep.subr.mxu0 0.0
    %300 = vmatpush2.msra.mxu0 0.0
    %301 = vmatprep.subr.mxu0 0.0
    %302 = vmatpush2.msra.mxu0 0.0
    %303 = vmatprep.subr.mxu0 0.0
    %304 = vmatpush2.msra.mxu0 0.0
    %305 = vmatprep.subr.mxu0 0.0
    %306 = vmatpush2.msra.mxu0 0.0
    %307 = vmatprep.subr.mxu0 0.0
    %308 = vmatpush2.msra.mxu0 0.0
    %309 = vmatprep.subr.mxu0 0.0
    %310 = vmatpush2.msra.mxu0 0.0
    %311 = vmatprep.subr.mxu0 0.0
    %312 = vmatpush2.msra.mxu0 0.0
    %313 = vmatprep.subr.mxu0 0.0
    %314 = vmatpush2.msra.mxu0 0.0
    %315 = vmatprep.subr.mxu0 0.0
    %316 = vmatpush2.msra.mxu0 0.0
    %317 = vmatprep.subr.mxu0 0.0
    %318 = vmatpush2.msra.mxu0 0.0
    %319 = vmatprep.mubr.f32.mxu0 0.0
    %320 = vmatmul.mubr.f32.gmra.mxu0 %v250
    %v321 = vpop.f32.mrf.mxu0
    %v322 = vadd.f32 %v246, %v321
    %v323 = vpop.f32.mrf.mxu0
    %324 = vmatprep.mubr.f32.mxu0 0.0
    %325 = vmatmul.mubr.f32.gmra.mxu0 %v253
    %v326 = vpop.f32.mrf.mxu0
    %v327 = vadd.f32 %v246, %v326
    %v328 = vpop.f32.mrf.mxu0
    %329 = vdwg.mxu0
    %v330 = vmax.f32 %v322, 0.0
    %v331 = vmax.f32 %v327, 0.0
    %v332 = vld [vmem:[%s7] sm:$0xff]
    %v333 = vld [vmem:[%s7 + $0x8] sm:$0xff]
    %v334 = vld [vmem:[%s7 + $0x10] sm:$0xff]
    %v335 = vld [vmem:[%s7 + $0x18] sm:$0xff]
    %v336 = vld [vmem:[%s7 + $0x20] sm:$0xff]
    %v337 = vld [vmem:[%s7 + $0x28] sm:$0xff]
    %v338 = vld [vmem:[%s7 + $0x30] sm:$0xff]
    %v339 = vld [vmem:[%s7 + $0x38] sm:$0xff]
    %v340 = vld [vmem:[%s7 + $0x40] sm:$0xff]
    %v341 = vld [vmem:[%s7 + $0x48] sm:$0xff]
    %v342 = vld [vmem:[%s7 + $0x50] sm:$0xff]
    %v343 = vld [vmem:[%s7 + $0x58] sm:$0xff]
    %v344 = vld [vmem:[%s7 + $0x60] sm:$0xff]
    %v345 = vld [vmem:[%s7 + $0x68] sm:$0xff]
    %v346 = vld [vmem:[%s7 + $0x70] sm:$0xff]
    %v347 = vld [vmem:[%s7 + $0x78] sm:$0xff]
    %v348 = vld [vmem:[%s8] sm:$0x1]
    %v350 = vlaneseq
    %v351 = vshrl.u32 %v350, 7
    %v352 = vsub.s32 0, %v351
    %v353 = vrot.slane %v348, %v352
    %355 = vmatprep.subr.mxu0 0.0
    %356 = vmatpush1.msra.mxu0 %v347
    %357 = vmatprep.subr.mxu0 0.0
    %358 = vmatpush1.msra.mxu0 %v346
    %359 = vmatprep.subr.mxu0 0.0
    %360 = vmatpush1.msra.mxu0 %v345
    %361 = vmatprep.subr.mxu0 0.0
    %362 = vmatpush1.msra.mxu0 %v344
    %363 = vmatprep.subr.mxu0 0.0
    %364 = vmatpush1.msra.mxu0 %v343
    %365 = vmatprep.subr.mxu0 0.0
    %366 = vmatpush1.msra.mxu0 %v342
    %367 = vmatprep.subr.mxu0 0.0
    %368 = vmatpush1.msra.mxu0 %v341
    %369 = vmatprep.subr.mxu0 0.0
    %370 = vmatpush1.msra.mxu0 %v340
    %371 = vmatprep.subr.mxu0 0.0
    %372 = vmatpush1.msra.mxu0 %v339
    %373 = vmatprep.subr.mxu0 0.0
    %374 = vmatpush1.msra.mxu0 %v338
    %375 = vmatprep.subr.mxu0 0.0
    %376 = vmatpush1.msra.mxu0 %v337
    %377 = vmatprep.subr.mxu0 0.0
    %378 = vmatpush1.msra.mxu0 %v336
    %379 = vmatprep.subr.mxu0 0.0
    %380 = vmatpush1.msra.mxu0 %v335
    %381 = vmatprep.subr.mxu0 0.0
    %382 = vmatpush1.msra.mxu0 %v334
    %383 = vmatprep.subr.mxu0 0.0
    %384 = vmatpush1.msra.mxu0 %v333
    %385 = vmatprep.subr.mxu0 0.0
    %386 = vmatpush1.msra.mxu0 %v332
    %387 = vmatprep.subr.mxu0 0.0
    %388 = vmatpush2.msra.mxu0 0.0
    %389 = vmatprep.subr.mxu0 0.0
    %390 = vmatpush2.msra.mxu0 0.0
    %391 = vmatprep.subr.mxu0 0.0
    %392 = vmatpush2.msra.mxu0 0.0
    %393 = vmatprep.subr.mxu0 0.0
    %394 = vmatpush2.msra.mxu0 0.0
    %395 = vmatprep.subr.mxu0 0.0
    %396 = vmatpush2.msra.mxu0 0.0
    %397 = vmatprep.subr.mxu0 0.0
    %398 = vmatpush2.msra.mxu0 0.0
    %399 = vmatprep.subr.mxu0 0.0
    %400 = vmatpush2.msra.mxu0 0.0
    %401 = vmatprep.subr.mxu0 0.0
    %402 = vmatpush2.msra.mxu0 0.0
    %403 = vmatprep.subr.mxu0 0.0
    %404 = vmatpush2.msra.mxu0 0.0
    %405 = vmatprep.subr.mxu0 0.0
    %406 = vmatpush2.msra.mxu0 0.0
    %407 = vmatprep.subr.mxu0 0.0
    %408 = vmatpush2.msra.mxu0 0.0
    %409 = vmatprep.subr.mxu0 0.0
    %410 = vmatpush2.msra.mxu0 0.0
    %411 = vmatprep.subr.mxu0 0.0
    %412 = vmatpush2.msra.mxu0 0.0
    %413 = vmatprep.subr.mxu0 0.0
    %414 = vmatpush2.msra.mxu0 0.0
    %415 = vmatprep.subr.mxu0 0.0
    %416 = vmatpush2.msra.mxu0 0.0
    %417 = vmatprep.subr.mxu0 0.0
    %418 = vmatpush2.msra.mxu0 0.0
    %419 = vmatprep.mubr.f32.mxu0 0.0
    %420 = vmatmul.mubr.f32.gmra.mxu0 %v330
    %v421 = vpop.f32.mrf.mxu0
    %v422 = vadd.f32 %v353, %v421
    %v423 = vpop.f32.mrf.mxu0
    %424 = vmatprep.mubr.f32.mxu0 0.0
    %425 = vmatmul.mubr.f32.gmra.mxu0 %v331
    %v426 = vpop.f32.mrf.mxu0
    %v427 = vadd.f32 %v353, %v426
    %v428 = vpop.f32.mrf.mxu0
    %429 = vdwg.mxu0
    %430 = vst.msk [vmem:[#allocation2] sm:$0xff] %vm139, %v422
    %431 = vst.msk [vmem:[#allocation2 + $0x8] sm:$0xff] %vm139, %v427
    // Predicated region
    $region38: #{tpu_custom_call.1} parent=1 // pred_check
      _
    $region39: #{tpu_custom_call.1} parent=1 // pred_check_branch
      %433 = sbr.rel (0) target = $region41
    $region40: #{tpu_custom_call.1} parent=1 // pred_region
      %s435 = ssub.s32 256, 256
      %436 = vsyncadd [#allocation3], %s435
      %s437 = sshll.u32 [#allocation2], 4
      %s438 = int_to_ptr.vmem [resolvable:$true] %s437
      %443 = dma.vmem_to_hbm [thread:$0]  %s438, 256, %s9, [#allocation3], 128, 128, 8
    $region41: #{tpu_custom_call.1} parent=1 // pred_fallthru
      _
    // Predicated region
    $region42: #{tpu_custom_call.1} parent=1 // pred_check
      _
    $region43: #{tpu_custom_call.1} parent=1 // pred_check_branch
      %445 = sbr.rel (0) target = $region45
    $region44: #{tpu_custom_call.1} parent=1 // pred_region
      %446 = dma.done [#allocation3], 256
    $region45: #{tpu_custom_call.1} parent=1 // pred_fallthru
      _
    %447 = vsyncpa [#allocation3], 1

</llo_original>
